<compile_context>
chip_gen: v6e
topology: v6e:2x2x1
jax: 0.10.0
libtpu: 0.0.40
codegen_flags: <defaults>
</compile_context>

<pallas_src>
import functools

import jax
import jax.numpy as jnp
from jax.experimental import pallas as pl
from jax.experimental.pallas import tpu as pltpu


_TARGET_BLOCK_BYTES = 2 * 1024 * 1024   # ~2 MiB per input per grid step
_SLAB = 32                              # rows folded per inner-loop iteration


def _round_up(a, m):
    return ((a + m - 1) // m) * m


def _detect_nshards():
    """2 on 2-TensorCore chips (v7x), 1 where a single core is visible.

    Defaults to 2 when undetectable: with in-kernel masking an extra shard on
    a 1-TC chip costs at most one (mostly masked) grid step and a second tiny
    partial slab, while halving per-core work on v7x.
    """
    try:
        info = pltpu.get_tpu_info()
    except Exception:
        return 2
    for attr in ("num_tensorcores", "tensorcores_per_chip",
                 "num_cores_per_chip", "num_cores", "core_count"):
        v = getattr(info, attr, None)
        if isinstance(v, int) and v >= 1:
            return min(int(v), 2)
    return 2


_NSHARDS = _detect_nshards()


def _make_vol_sums_kernel(*, tr, w, rows, tiles_per_shard):
    """Kernel accumulating per-lane sum(sigmoid(x)) and sum(t) per shard."""
    groups = tr // _SLAB

    def kernel(x_ref, t_ref, out_ref, acc_p, acc_t):
        s = pl.program_id(0)                      # shard (TensorCore) index
        i = pl.program_id(1)                      # tile index within shard

        @pl.when(i == 0)
        def _():
            acc_p[...] = jnp.zeros_like(acc_p)
            acc_t[...] = jnp.zeros_like(acc_t)

        # Logical (unclamped) first global row of this tile; used both to pick
        # the masked path and to zero rows past the true end of the array.
        tile_row0 = (s * tiles_per_shard + i) * tr
        zero = jnp.zeros((8, w), jnp.float32)

        def make_body(masked):
            if masked:
                local_rows = jax.lax.broadcasted_iota(jnp.int32, (_SLAB, w), 0)

            def body(g, carry):
                pp, tt = carry
                off = pl.multiple_of(g * _SLAB, _SLAB)
                xs = x_ref[pl.ds(off, _SLAB), :].astype(jnp.float32)
                ts = t_ref[pl.ds(off, _SLAB), :].astype(jnp.float32)
                ps = jax.nn.sigmoid(xs)
                if masked:
                    rid = tile_row0 + off + local_rows
                    valid = rid < rows
                    ps = jnp.where(valid, ps, 0.0)
                    ts = jnp.where(valid, ts, 0.0)
                # Fold the 32-row slab into the (8, w) register carries: pure
                # full-vreg VALU adds, no cross-lane work, hides under DMA.
                for j in range(_SLAB // 8):
                    pp = pp + ps[j * 8:(j + 1) * 8, :]
                    tt = tt + ts[j * 8:(j + 1) * 8, :]
                return pp, tt

            return body

        def accumulate(masked):
            pp, tt = jax.lax.fori_loop(0, groups, make_body(masked),
                                       (zero, zero))
            acc_p[...] += pp
            acc_t[...] += tt

        @pl.when(tile_row0 + tr <= rows)          # every row of tile is valid
        def _():
            accumulate(masked=False)

        @pl.when(tile_row0 + tr > rows)           # ragged / duplicate tile
        def _():
            accumulate(masked=True)

        # Cross-sublane reduce + lane-dense store only once per shard.
        @pl.when(i == tiles_per_shard - 1)
        def _():
            out_ref[0, 0:1, :] = jnp.sum(acc_p[...], axis=0, keepdims=True)
            out_ref[0, 1:2, :] = jnp.sum(acc_t[...], axis=0, keepdims=True)

    return kernel


def _choose_lane_width(n):
    # Largest lane width that divides n (zero-copy reshape) with enough rows.
    for w in (512, 256, 128):
        if n % w == 0 and (n // w) >= 64:
            return w
    return 128


def _volume_sums(x, t):
    """Return (sum(sigmoid(x)), sum(t)) as f32 scalars over all elements."""
    assert x.shape == t.shape
    assert jnp.issubdtype(x.dtype, jnp.floating)
    n = x.size
    x_flat = x.reshape(-1)                        # free bitcast, no copy
    t_flat = t.reshape(-1)

    w = _choose_lane_width(n)
    rows = n // w
    s_p = jnp.float32(0.0)
    s_t = jnp.float32(0.0)

    if rows >= 32:
        main = rows * w
        itemsize = max(x.dtype.itemsize, t.dtype.itemsize)
        tr_target = max(32, (_TARGET_BLOCK_BYTES // (w * itemsize)) // 32 * 32)
        tr = min(tr_target,
                 _round_up(pl.cdiv(rows, _NSHARDS), 32),
                 (rows // 32) * 32)
        total_tiles = pl.cdiv(rows, tr)
        tiles_per_shard = pl.cdiv(total_tiles, _NSHARDS)

        if main == n:
            x2 = x_flat.reshape(rows, w)          # no copy
            t2 = t_flat.reshape(rows, w)
        else:
            # Rare (n not a multiple of 128): this slice materializes a copy.
            x2 = x_flat[:main].reshape(rows, w)
            t2 = t_flat[:main].reshape(rows, w)

        def in_map(si, ti):
            # Clamp so over-allocated shard tiles DMA a valid block; the
            # kernel masks them to zero using the *logical* row origin.
            return (jnp.minimum(si * tiles_per_shard + ti, total_tiles - 1), 0)

        partials = pl.pallas_call(
            _make_vol_sums_kernel(tr=tr, w=w, rows=rows,
                                  tiles_per_shard=tiles_per_shard),
            out_shape=jax.ShapeDtypeStruct((_NSHARDS, 2, w), jnp.float32),
            grid_spec=pltpu.PrefetchScalarGridSpec(
                num_scalar_prefetch=0,
                grid=(_NSHARDS, tiles_per_shard),
                in_specs=[
                    pl.BlockSpec((tr, w), in_map),
                    pl.BlockSpec((tr, w), in_map),
                ],
                out_specs=pl.BlockSpec((1, 2, w), lambda si, ti: (si, 0, 0)),
                scratch_shapes=[
                    pltpu.VMEM((8, w), jnp.float32),
                    pltpu.VMEM((8, w), jnp.float32),
                ],
            ),
            compiler_params=pltpu.CompilerParams(
                dimension_semantics=("parallel", "arbitrary"),
            ),
        )(x2, t2)

        s_p = s_p + jnp.sum(partials[:, 0, :])
        s_t = s_t + jnp.sum(partials[:, 1, :])
        tail_x = x_flat[main:]
        tail_t = t_flat[main:]
    else:
        # Tiny inputs: not worth a kernel launch; handled below.
        tail_x = x_flat
        tail_t = t_flat

    if tail_x.size:
        s_p = s_p + jnp.sum(jax.nn.sigmoid(tail_x.astype(jnp.float32)))
        s_t = s_t + jnp.sum(tail_t.astype(jnp.float32))

    return s_p, s_t


@functools.partial(jax.jit, static_argnames=("n_classes",))
def volume_loss(inp, target, n_classes=1):
    """VolumeLoss.forward, sigmoid (n_classes == 1) path."""
    assert n_classes == 1, "multiclass (softmax + one-hot) path not implemented"
    # TODO(synk): n_classes > 1 path (softmax over channels + One_Hot(target)).
    s_p, s_t = _volume_sums(inp, target)          # sum sigmoid(x), sum target
    n_plus = s_t
    safe_n_plus = jnp.where(n_plus > 0, n_plus, 1.0)
    vol = jnp.abs(s_p - s_t) / n_classes / safe_n_plus
    vol = jnp.where(n_plus > 0, vol, 0.0)         # ZeroDivisionError -> 0.0
    return 0.5 * vol


def _reference(inp, target, n_classes=1):
    b = inp.shape[0]
    p = jax.nn.sigmoid(inp.astype(jnp.float32)).reshape(b, n_classes, -1)
    t = target.astype(jnp.float32).reshape(b, n_classes, -1)
    n_plus = jnp.sum(t)
    vol = jnp.abs(jnp.sum(p - t)) / n_classes / jnp.where(n_plus > 0, n_plus, 1.0)
    vol = jnp.where(n_plus > 0, vol, 0.0)
    return 0.5 * vol


if __name__ == "__main__":
    key = jax.random.PRNGKey(0)
    k1, k2 = jax.random.split(key)

    # Volumetric single-class input: (batch, n_classes, D, H, W).
    B, C, D, H, W = 2, 1, 8, 16, 16
    x = jax.random.normal(k1, (B, C, D, H, W), dtype=jnp.float32)
    # Target stays in a narrow native dtype (int8); the kernel casts in VMEM.
    tgt = (jax.random.uniform(k2, (B, C, D, H, W)) > 0.5).astype(jnp.int8)

    loss = volume_loss(x, tgt, n_classes=1)
    loss = jax.block_until_ready(loss)

    ref = _reference(x, tgt, n_classes=1)
    assert jnp.allclose(loss, ref, atol=1e-5, rtol=1e-3), (loss, ref)

    print("KERNEL_OK")
</pallas_src>

<mosaic_0001>
module attributes {stable_mosaic.version = 11 : i64} {
  func.func @kernel(%arg0: i32, %arg1: i32, %arg2: memref<32x128xf32, #tpu.memory_space<vmem>>, %arg3: memref<32x128xi8, #tpu.memory_space<vmem>>, %arg4: memref<1x2x128xf32, #tpu.memory_space<vmem>>, %arg5: memref<8x128xf32, #tpu.memory_space<vmem>>, %arg6: memref<8x128xf32, #tpu.memory_space<vmem>>) attributes {dimension_semantics = [#tpu.dimension_semantics<parallel>, #tpu.dimension_semantics<arbitrary>], iteration_bounds = array<i64: 2, 1>, scalar_prefetch = 0 : i64, scratch_operands = 2 : i64, tpu.core_type = #tpu.core_type<tc>, window_params = [{transform_indices = @transform_0, window_bounds = array<i64: 32, 128>}, {transform_indices = @transform_1, window_bounds = array<i64: 32, 128>}, {transform_indices = @transform_2, window_bounds = array<i64: 1, 2, 128>}]} {
    %c0_i32 = arith.constant 0 : i32
    %0 = arith.cmpi eq, %arg1, %c0_i32 : i32
    %1 = arith.extui %0 : i1 to i32
    %c0_i32_0 = arith.constant 0 : i32
    %2 = arith.cmpi ne, %1, %c0_i32_0 : i32
    scf.if %2 {
      %cst_9 = arith.constant 0.000000e+00 : f32
      %18 = vector.broadcast %cst_9 : f32 to vector<8x128xf32>
      %c0 = arith.constant 0 : index
      %c0_10 = arith.constant 0 : index
      %19 = vector.load %arg5[%c0, %c0_10] : memref<8x128xf32, #tpu.memory_space<vmem>>, vector<8x128xf32>
      tpu.vector_store %arg5[%c0, %c0_10], %18 {strides = array<i32>} : memref<8x128xf32, #tpu.memory_space<vmem>>, vector<8x128xf32>,
      %cst_11 = arith.constant 0.000000e+00 : f32
      %20 = vector.broadcast %cst_11 : f32 to vector<8x128xf32>
      %c0_12 = arith.constant 0 : index
      %c0_13 = arith.constant 0 : index
      %21 = vector.load %arg6[%c0_12, %c0_13] : memref<8x128xf32, #tpu.memory_space<vmem>>, vector<8x128xf32>
      tpu.vector_store %arg6[%c0_12, %c0_13], %20 {strides = array<i32>} : memref<8x128xf32, #tpu.memory_space<vmem>>, vector<8x128xf32>,
    } else {
    }
    %c1_i32 = arith.constant 1 : i32
    %3 = arith.muli %arg0, %c1_i32 : i32
    %4 = arith.addi %3, %arg1 : i32
    %c32_i32 = arith.constant 32 : i32
    %5 = arith.muli %4, %c32_i32 : i32
    %cst = arith.constant 0.000000e+00 : f32
    %6 = vector.broadcast %cst : f32 to vector<8x128xf32>
    %c32_i32_1 = arith.constant 32 : i32
    %7 = arith.addi %5, %c32_i32_1 : i32
    %c32_i32_2 = arith.constant 32 : i32
    %8 = arith.cmpi sle, %7, %c32_i32_2 : i32
    %9 = arith.extui %8 : i1 to i32
    %c0_i32_3 = arith.constant 0 : i32
    %10 = arith.cmpi ne, %9, %c0_i32_3 : i32
    scf.if %10 {
      %c0_i32_9 = arith.constant 0 : i32
      %c32_i32_10 = arith.constant 32 : i32
      %18 = arith.muli %c0_i32_9, %c32_i32_10 : i32
      %19 = tpu.assume_multiple %18, 32 : i32
      %20 = arith.index_cast %19 : i32 to index
      %c0 = arith.constant 0 : index
      %21 = vector.load %arg2[%20, %c0] : memref<32x128xf32, #tpu.memory_space<vmem>>, vector<32x128xf32>
      %22 = arith.index_cast %19 : i32 to index
      %c0_11 = arith.constant 0 : index
      %23 = vector.load %arg3[%22, %c0_11] : memref<32x128xi8, #tpu.memory_space<vmem>>, vector<32x128xi8>
      %24 = arith.sitofp %23 : vector<32x128xi8> to vector<32x128xf32>
      %25 = arith.negf %21 : vector<32x128xf32>
      %26 = math.exp %25 : vector<32x128xf32>
      %cst_12 = arith.constant 1.000000e+00 : f32
      %27 = vector.broadcast %cst_12 : f32 to vector<32x128xf32>
      %28 = arith.addf %27, %26 : vector<32x128xf32>
      %29 = arith.divf %27, %28 : vector<32x128xf32>
      %30 = vector.extract_strided_slice %29 {offsets = [0, 0], sizes = [8, 128], strides = [1, 1]} : vector<32x128xf32> to vector<8x128xf32>
      %31 = arith.addf %6, %30 : vector<8x128xf32>
      %32 = vector.extract_strided_slice %24 {offsets = [0, 0], sizes = [8, 128], strides = [1, 1]} : vector<32x128xf32> to vector<8x128xf32>
      %33 = arith.addf %6, %32 : vector<8x128xf32>
      %34 = vector.extract_strided_slice %29 {offsets = [8, 0], sizes = [8, 128], strides = [1, 1]} : vector<32x128xf32> to vector<8x128xf32>
      %35 = arith.addf %31, %34 : vector<8x128xf32>
      %36 = vector.extract_strided_slice %24 {offsets = [8, 0], sizes = [8, 128], strides = [1, 1]} : vector<32x128xf32> to vector<8x128xf32>
      %37 = arith.addf %33, %36 : vector<8x128xf32>
      %38 = vector.extract_strided_slice %29 {offsets = [16, 0], sizes = [8, 128], strides = [1, 1]} : vector<32x128xf32> to vector<8x128xf32>
      %39 = arith.addf %35, %38 : vector<8x128xf32>
      %40 = vector.extract_strided_slice %24 {offsets = [16, 0], sizes = [8, 128], strides = [1, 1]} : vector<32x128xf32> to vector<8x128xf32>
      %41 = arith.addf %37, %40 : vector<8x128xf32>
      %42 = vector.extract_strided_slice %29 {offsets = [24, 0], sizes = [8, 128], strides = [1, 1]} : vector<32x128xf32> to vector<8x128xf32>
      %43 = arith.addf %39, %42 : vector<8x128xf32>
      %44 = vector.extract_strided_slice %24 {offsets = [24, 0], sizes = [8, 128], strides = [1, 1]} : vector<32x128xf32> to vector<8x128xf32>
      %45 = arith.addf %41, %44 : vector<8x128xf32>
      %c1_i32_13 = arith.constant 1 : i32
      %c0_14 = arith.constant 0 : index
      %c0_15 = arith.constant 0 : index
      %46 = vector.load %arg5[%c0_14, %c0_15] : memref<8x128xf32, #tpu.memory_space<vmem>>, vector<8x128xf32>
      %47 = arith.addf %46, %43 : vector<8x128xf32>
      %c0_16 = arith.constant 0 : index
      %c0_17 = arith.constant 0 : index
      %48 = vector.load %arg5[%c0_16, %c0_17] : memref<8x128xf32, #tpu.memory_space<vmem>>, vector<8x128xf32>
      tpu.vector_store %arg5[%c0_16, %c0_17], %47 {strides = array<i32>} : memref<8x128xf32, #tpu.memory_space<vmem>>, vector<8x128xf32>,
      %c0_18 = arith.constant 0 : index
      %c0_19 = arith.constant 0 : index
      %49 = vector.load %arg6[%c0_18, %c0_19] : memref<8x128xf32, #tpu.memory_space<vmem>>, vector<8x128xf32>
      %50 = arith.addf %49, %45 : vector<8x128xf32>
      %c0_20 = arith.constant 0 : index
      %c0_21 = arith.constant 0 : index
      %51 = vector.load %arg6[%c0_20, %c0_21] : memref<8x128xf32, #tpu.memory_space<vmem>>, vector<8x128xf32>
      tpu.vector_store %arg6[%c0_20, %c0_21], %50 {strides = array<i32>} : memref<8x128xf32, #tpu.memory_space<vmem>>, vector<8x128xf32>,
    } else {
    }
    %c32_i32_4 = arith.constant 32 : i32
    %11 = arith.addi %5, %c32_i32_4 : i32
    %c32_i32_5 = arith.constant 32 : i32
    %12 = arith.cmpi sgt, %11, %c32_i32_5 : i32
    %13 = arith.extui %12 : i1 to i32
    %c0_i32_6 = arith.constant 0 : i32
    %14 = arith.cmpi ne, %13, %c0_i32_6 : i32
    scf.if %14 {
      %18 = tpu.iota {dimensions = array<i32: 0>} : vector<32x128xi32>
      %c0_i32_9 = arith.constant 0 : i32
      %c32_i32_10 = arith.constant 32 : i32
      %19 = arith.muli %c0_i32_9, %c32_i32_10 : i32
      %20 = tpu.assume_multiple %19, 32 : i32
      %21 = arith.index_cast %20 : i32 to index
      %c0 = arith.constant 0 : index
      %22 = vector.load %arg2[%21, %c0] : memref<32x128xf32, #tpu.memory_space<vmem>>, vector<32x128xf32>
      %23 = arith.index_cast %20 : i32 to index
      %c0_11 = arith.constant 0 : index
      %24 = vector.load %arg3[%23, %c0_11] : memref<32x128xi8, #tpu.memory_space<vmem>>, vector<32x128xi8>
      %25 = arith.sitofp %24 : vector<32x128xi8> to vector<32x128xf32>
      %26 = arith.negf %22 : vector<32x128xf32>
      %27 = math.exp %26 : vector<32x128xf32>
      %cst_12 = arith.constant 1.000000e+00 : f32
      %28 = vector.broadcast %cst_12 : f32 to vector<32x128xf32>
      %29 = arith.addf %28, %27 : vector<32x128xf32>
      %30 = arith.divf %28, %29 : vector<32x128xf32>
      %31 = arith.addi %5, %20 : i32
      %32 = vector.broadcast %31 : i32 to vector<32x128xi32>
      %33 = arith.addi %32, %18 : vector<32x128xi32>
      %c32_i32_13 = arith.constant 32 : i32
      %34 = vector.broadcast %c32_i32_13 : i32 to vector<32x128xi32>
      %35 = arith.cmpi slt, %33, %34 : vector<32x128xi32>
      %cst_14 = arith.constant 0.000000e+00 : f32
      %36 = vector.broadcast %cst_14 : f32 to vector<32x128xf32>
      %37 = arith.select %35, %30, %36 : vector<32x128xi1>, vector<32x128xf32>
      %cst_15 = arith.constant 0.000000e+00 : f32
      %38 = vector.broadcast %cst_15 : f32 to vector<32x128xf32>
      %39 = arith.select %35, %25, %38 : vector<32x128xi1>, vector<32x128xf32>
      %40 = vector.extract_strided_slice %37 {offsets = [0, 0], sizes = [8, 128], strides = [1, 1]} : vector<32x128xf32> to vector<8x128xf32>
      %41 = arith.addf %6, %40 : vector<8x128xf32>
      %42 = vector.extract_strided_slice %39 {offsets = [0, 0], sizes = [8, 128], strides = [1, 1]} : vector<32x128xf32> to vector<8x128xf32>
      %43 = arith.addf %6, %42 : vector<8x128xf32>
      %44 = vector.extract_strided_slice %37 {offsets = [8, 0], sizes = [8, 128], strides = [1, 1]} : vector<32x128xf32> to vector<8x128xf32>
      %45 = arith.addf %41, %44 : vector<8x128xf32>
      %46 = vector.extract_strided_slice %39 {offsets = [8, 0], sizes = [8, 128], strides = [1, 1]} : vector<32x128xf32> to vector<8x128xf32>
      %47 = arith.addf %43, %46 : vector<8x128xf32>
      %48 = vector.extract_strided_slice %37 {offsets = [16, 0], sizes = [8, 128], strides = [1, 1]} : vector<32x128xf32> to vector<8x128xf32>
      %49 = arith.addf %45, %48 : vector<8x128xf32>
      %50 = vector.extract_strided_slice %39 {offsets = [16, 0], sizes = [8, 128], strides = [1, 1]} : vector<32x128xf32> to vector<8x128xf32>
      %51 = arith.addf %47, %50 : vector<8x128xf32>
      %52 = vector.extract_strided_slice %37 {offsets = [24, 0], sizes = [8, 128], strides = [1, 1]} : vector<32x128xf32> to vector<8x128xf32>
      %53 = arith.addf %49, %52 : vector<8x128xf32>
      %54 = vector.extract_strided_slice %39 {offsets = [24, 0], sizes = [8, 128], strides = [1, 1]} : vector<32x128xf32> to vector<8x128xf32>
      %55 = arith.addf %51, %54 : vector<8x128xf32>
      %c1_i32_16 = arith.constant 1 : i32
      %c0_17 = arith.constant 0 : index
      %c0_18 = arith.constant 0 : index
      %56 = vector.load %arg5[%c0_17, %c0_18] : memref<8x128xf32, #tpu.memory_space<vmem>>, vector<8x128xf32>
      %57 = arith.addf %56, %53 : vector<8x128xf32>
      %c0_19 = arith.constant 0 : index
      %c0_20 = arith.constant 0 : index
      %58 = vector.load %arg5[%c0_19, %c0_20] : memref<8x128xf32, #tpu.memory_space<vmem>>, vector<8x128xf32>
      tpu.vector_store %arg5[%c0_19, %c0_20], %57 {strides = array<i32>} : memref<8x128xf32, #tpu.memory_space<vmem>>, vector<8x128xf32>,
      %c0_21 = arith.constant 0 : index
      %c0_22 = arith.constant 0 : index
      %59 = vector.load %arg6[%c0_21, %c0_22] : memref<8x128xf32, #tpu.memory_space<vmem>>, vector<8x128xf32>
      %60 = arith.addf %59, %55 : vector<8x128xf32>
      %c0_23 = arith.constant 0 : index
      %c0_24 = arith.constant 0 : index
      %61 = vector.load %arg6[%c0_23, %c0_24] : memref<8x128xf32, #tpu.memory_space<vmem>>, vector<8x128xf32>
      tpu.vector_store %arg6[%c0_23, %c0_24], %60 {strides = array<i32>} : memref<8x128xf32, #tpu.memory_space<vmem>>, vector<8x128xf32>,
    } else {
    }
    %c0_i32_7 = arith.constant 0 : i32
    %15 = arith.cmpi eq, %arg1, %c0_i32_7 : i32
    %16 = arith.extui %15 : i1 to i32
    %c0_i32_8 = arith.constant 0 : i32
    %17 = arith.cmpi ne, %16, %c0_i32_8 : i32
    scf.if %17 {
      %c0 = arith.constant 0 : index
      %c0_9 = arith.constant 0 : index
      %18 = vector.load %arg5[%c0, %c0_9] : memref<8x128xf32, #tpu.memory_space<vmem>>, vector<8x128xf32>
      %cst_10 = arith.constant dense<0.000000e+00> : vector<128xf32>
      %19 = vector.multi_reduction <add>, %18, %cst_10 [0] : vector<8x128xf32> to vector<128xf32>
      %20 = vector.shape_cast %19 : vector<128xf32> to vector<1x128xf32>
      %c0_11 = arith.constant 0 : index
      %c0_12 = arith.constant 0 : index
      %c0_13 = arith.constant 0 : index
      %21 = vector.load %arg4[%c0_11, %c0_12, %c0_13] : memref<1x2x128xf32, #tpu.memory_space<vmem>>, vector<1x1x128xf32>
      %22 = vector.shape_cast %21 : vector<1x1x128xf32> to vector<1x128xf32>
      %23 = vector.shape_cast %20 : vector<1x128xf32> to vector<1x1x128xf32>
      tpu.vector_store %arg4[%c0_11, %c0_12, %c0_13], %23 {strides = array<i32>} : memref<1x2x128xf32, #tpu.memory_space<vmem>>, vector<1x1x128xf32>,
      %c0_14 = arith.constant 0 : index
      %c0_15 = arith.constant 0 : index
      %24 = vector.load %arg6[%c0_14, %c0_15] : memref<8x128xf32, #tpu.memory_space<vmem>>, vector<8x128xf32>
      %cst_16 = arith.constant dense<0.000000e+00> : vector<128xf32>
      %25 = vector.multi_reduction <add>, %24, %cst_16 [0] : vector<8x128xf32> to vector<128xf32>
      %26 = vector.shape_cast %25 : vector<128xf32> to vector<1x128xf32>
      %c0_17 = arith.constant 0 : index
      %c1 = arith.constant 1 : index
      %c0_18 = arith.constant 0 : index
      %27 = vector.load %arg4[%c0_17, %c1, %c0_18] : memref<1x2x128xf32, #tpu.memory_space<vmem>>, vector<1x1x128xf32>
      %28 = vector.shape_cast %27 : vector<1x1x128xf32> to vector<1x128xf32>
      %29 = vector.shape_cast %26 : vector<1x128xf32> to vector<1x1x128xf32>
      tpu.vector_store %arg4[%c0_17, %c1, %c0_18], %29 {strides = array<i32>} : memref<1x2x128xf32, #tpu.memory_space<vmem>>, vector<1x1x128xf32>,
    } else {
    }
    return
  }
  func.func @transform_0(%arg0: i32, %arg1: i32) -> (i32, i32) {
    %c1_i32 = arith.constant 1 : i32
    %0 = arith.muli %arg0, %c1_i32 : i32
    %1 = arith.addi %0, %arg1 : i32
    %c0_i32 = arith.constant 0 : i32
    %2 = arith.minsi %1, %c0_i32 : i32
    %c0_i32_0 = arith.constant 0 : i32
    %c0_i32_1 = arith.constant 0 : i32
    return %2, %c0_i32_0 : i32, i32
  }
  func.func @transform_1(%arg0: i32, %arg1: i32) -> (i32, i32) {
    %c1_i32 = arith.constant 1 : i32
    %0 = arith.muli %arg0, %c1_i32 : i32
    %1 = arith.addi %0, %arg1 : i32
    %c0_i32 = arith.constant 0 : i32
    %2 = arith.minsi %1, %c0_i32 : i32
    %c0_i32_0 = arith.constant 0 : i32
    %c0_i32_1 = arith.constant 0 : i32
    return %2, %c0_i32_0 : i32, i32
  }
  func.func @transform_2(%arg0: i32, %arg1: i32) -> (i32, i32, i32) {
    %c0_i32 = arith.constant 0 : i32
    %c0_i32_0 = arith.constant 0 : i32
    %c0_i32_1 = arith.constant 0 : i32
    return %arg0, %c0_i32, %c0_i32_0 : i32, i32, i32
  }
}

</mosaic_0001>

<llo_original>
// kernel: volume_loss.1
$region0: #{volume_loss.1}
  #allocation0 [shape = 'u32[]', space=smem, size = 0x4, offset = 0x4, fixed_abs, tag = 'smem constant byte address 0x4 - core index']
  #allocation1 [shape = 'u32[144,128]{1,0:T(1,128)}', space=vmem, size = 0x12000, scoped, tag = 'internal scratch']
  #allocation2 [shape = 'f32[8,128]{1,0:T(8,128)}', space=vmem, size = 0x1000, scoped, tag = 'scratch operand']
  #allocation3 [shape = 'f32[8,128]{1,0:T(8,128)}', space=vmem, size = 0x1000, scoped, tag = 'scratch operand']
  %s0 = inlined_call_operand.vmem [shape: f32[32,128], index: 0, kind: input, shape index: {}]
  %s1 = inlined_call_operand.vmem [shape: s8[32,128], index: 1, kind: input, shape index: {}]
  %s2 = inlined_call_operand.vmem [shape: f32[2,2,128], index: 2, kind: output, shape index: {}]
  %s3 = sld [smem:[#allocation0]]
  $region57: #{volume_loss.1} parent=0
    _
  %s5 = ssub.s32 1, %s3
  %s6 = scalar_select 0, %s5, %s3
  loop: start=0, step=1, limit=4
  $region2: #{volume_loss.1} parent=0 // loop_pre_header
    _
  $region3: #{volume_loss.1} parent=0 // loop_header
    %s8 = sphi 0, %s12
    %p9 = scmp.ge.s32.totalorder %s8, 4
    %s15 = sphi 0, %s27
    %s16 = sphi 0, %s23
    %s17 = sphi 0, %s15
    %s18 = sphi 0, %s16
    %s19 = sphi 0, %s17
    %s20 = sphi 0, %s18
    %s36 = sphi 0, %s38
    %s39 = sphi 0, %s36
    %s40 = sphi 0, %s39
    %s56 = sphi 0, %s40
    %s68 = sphi 0, %s70
    %s71 = sphi 0, %s68
    %s72 = sphi 0, %s71
    %s88 = sphi 0, %s72
    %s94 = sphi 0, %s96
    %s97 = sphi 0, %s94
    %s98 = sphi 0, %s97
    %s114 = sphi 0, %s98
  $region4: #{volume_loss.1} parent=0 // loop_header_branch
    %11 = sbr.rel (%p9) target = $region8
  $region5: #{volume_loss.1} parent=0 // loop_body
    %s13 = ssub.s32 %s8, 1
    %s14 = ssub.s32 %s8, 2
    %s21 = sadd.s32 1, %s16
    %p22 = scmp.ge.s32.totalorder %s21, 1
    %s23 = scalar_select %p22, 0, %s21
    %s24 = sadd.s32 1, %s15
    %s25 = scalar_select %p22, %s24, %s15
    %p26 = scmp.ge.s32.totalorder %s25, 2
    %s27 = scalar_select %p26, 0, %s25
    %s28 = sadd.s32 %s15, %s16
    %p29 = scmp.lt.s32.totalorder %s28, 0
    %s30 = scalar_select %p29, %s28, 0
    %s31 = sadd.s32 %s27, %s23
    %p32 = scmp.lt.s32.totalorder %s31, 0
    %s33 = scalar_select %p32, %s31, 0
    %s34 = ssub.s32 %s30, %s33
    %p35 = scmp.eq.s32.totalorder %s34, 0
    %s37 = sadd.s32 %s36, 1
    %s38 = scalar_select %p35, %s36, %s37
    %p41 = pneg %p35
    %p42 = scmp.eq.s32.totalorder %s8, 1
    %p43 = por %p41, %p42
    %p44 = scmp.ne.s32.totalorder %s36, %s39
    %p45 = scmp.eq.s32.totalorder %s8, 0
    %p46 = por %p44, %p45
    %p47 = scmp.ne.s32.totalorder %s36, %s39
    %p48 = scmp.eq.s32.totalorder %s13, 1
    %p49 = por %p47, %p48
    %p50 = scmp.ne.s32.totalorder %s39, %s40
    %p51 = scmp.eq.s32.totalorder %s13, 0
    %p52 = por %p50, %p51
    %p53 = scmp.ne.s32.totalorder %s39, %s40
    %p54 = scmp.eq.s32.totalorder %s14, 1
    %p55 = por %p53, %p54
    %p57 = scmp.ne.s32.totalorder %s40, %s56
    %p58 = scmp.eq.s32.totalorder %s14, 0
    %p59 = por %p57, %p58
    %s60 = sadd.s32 %s15, %s16
    %p61 = scmp.lt.s32.totalorder %s60, 0
    %s62 = scalar_select %p61, %s60, 0
    %s63 = sadd.s32 %s27, %s23
    %p64 = scmp.lt.s32.totalorder %s63, 0
    %s65 = scalar_select %p64, %s63, 0
    %s66 = ssub.s32 %s62, %s65
    %p67 = scmp.eq.s32.totalorder %s66, 0
    %s69 = sadd.s32 %s68, 1
    %s70 = scalar_select %p67, %s68, %s69
    %p73 = pneg %p67
    %p74 = scmp.eq.s32.totalorder %s8, 1
    %p75 = por %p73, %p74
    %p76 = scmp.ne.s32.totalorder %s68, %s71
    %p77 = scmp.eq.s32.totalorder %s8, 0
    %p78 = por %p76, %p77
    %p79 = scmp.ne.s32.totalorder %s68, %s71
    %p80 = scmp.eq.s32.totalorder %s13, 1
    %p81 = por %p79, %p80
    %p82 = scmp.ne.s32.totalorder %s71, %s72
    %p83 = scmp.eq.s32.totalorder %s13, 0
    %p84 = por %p82, %p83
    %p85 = scmp.ne.s32.totalorder %s71, %s72
    %p86 = scmp.eq.s32.totalorder %s14, 1
    %p87 = por %p85, %p86
    %p89 = scmp.ne.s32.totalorder %s72, %s88
    %p90 = scmp.eq.s32.totalorder %s14, 0
    %p91 = por %p89, %p90
    %s92 = ssub.s32 %s15, %s27
    %p93 = scmp.eq.s32.totalorder %s92, 0
    %s95 = sadd.s32 %s94, 1
    %s96 = scalar_select %p93, %s94, %s95
    %p99 = pneg %p93
    %p100 = scmp.eq.s32.totalorder %s8, 1
    %p101 = por %p99, %p100
    %p102 = scmp.ne.s32.totalorder %s94, %s97
    %p103 = scmp.eq.s32.totalorder %s8, 0
    %p104 = por %p102, %p103
    %p105 = scmp.ne.s32.totalorder %s94, %s97
    %p106 = scmp.eq.s32.totalorder %s13, 1
    %p107 = por %p105, %p106
    %p108 = scmp.ne.s32.totalorder %s97, %s98
    %p109 = scmp.eq.s32.totalorder %s13, 0
    %p110 = por %p108, %p109
    %p111 = scmp.ne.s32.totalorder %s97, %s98
    %p112 = scmp.eq.s32.totalorder %s14, 1
    %p113 = por %p111, %p112
    %p115 = scmp.ne.s32.totalorder %s98, %s114
    %p116 = scmp.eq.s32.totalorder %s14, 0
    %p117 = por %p115, %p116
    %p118 = scmp.le.s32.totalorder 1, %s8
    %p119 = scmp.lt.s32.totalorder %s8, 3
    %p120 = pnand %p118, %p119
    %p121 = pneg %p120
    // Predicated region
    $region9: #{volume_loss.1} parent=5 // pred_check
      _
    $region10: #{volume_loss.1} parent=5 // pred_check_branch
      %123 = sbr.rel (%p120) target = $region12
    $region11: #{volume_loss.1} parent=5 // pred_region
      %s124 = ssub.s32 %s8, 1
    $region12: #{volume_loss.1} parent=5 // pred_fallthru
      _
    %p125 = scmp.lt.s32.totalorder %s8, 2
    // Predicated region
    $region13: #{volume_loss.1} parent=5 // pred_check
      %p126 = pneg %p125
    $region14: #{volume_loss.1} parent=5 // pred_check_branch
      %128 = sbr.rel (%p126) target = $region16
    $region15: #{volume_loss.1} parent=5 // pred_region
      // Predicated region
      $region17: #{volume_loss.1} parent=15 // pred_check
        %p129 = pneg %p46
      $region18: #{volume_loss.1} parent=15 // pred_check_branch
        %131 = sbr.rel (%p129) target = $region20
      $region19: #{volume_loss.1} parent=15 // pred_region
        %s132 = sadd.s32 %s15, %s16
        %p133 = scmp.lt.s32.totalorder %s132, 0
        %s134 = scalar_select %p133, %s132, 0
        %s135 = smul.u32 4, %s134
        %p136 = scmp.lt.s32.totalorder %s135, 3
        %s137 = scalar_select %p136, %s135, 3
        %s138 = smul.addr %s137, 8
        %s139 = scalar_lea.vmem %s0, %s138
        %s140 = sadd.s32 %s15, %s16
        %p141 = scmp.lt.s32.totalorder %s140, 0
        %s142 = scalar_select %p141, %s140, 0
        %s143 = smul.u32 4, %s142
      $region20: #{volume_loss.1} parent=15 // pred_fallthru
        _
      // Predicated region
      $region21: #{volume_loss.1} parent=15 // pred_check
        %p144 = pneg %p78
      $region22: #{volume_loss.1} parent=15 // pred_check_branch
        %146 = sbr.rel (%p144) target = $region24
      $region23: #{volume_loss.1} parent=15 // pred_region
        %s147 = sadd.s32 %s15, %s16
        %p148 = scmp.lt.s32.totalorder %s147, 0
        %s149 = scalar_select %p148, %s147, 0
        %p150 = scmp.lt.s32.totalorder %s149, 0
        %s151 = scalar_select %p150, %s149, 0
        %s152 = smul.addr %s151, 8
        %s153 = scalar_lea.vmem %s1, %s152
        %s154 = sadd.s32 %s15, %s16
        %p155 = scmp.lt.s32.totalorder %s154, 0
        %s156 = scalar_select %p155, %s154, 0
      $region24: #{volume_loss.1} parent=15 // pred_fallthru
        _
    $region16: #{volume_loss.1} parent=5 // pred_fallthru
      _
    %p157 = scmp.le.s32.totalorder 1, %s8
    %p158 = scmp.lt.s32.totalorder %s8, 3
    %p159 = pnand %p157, %p158
    %p160 = pneg %p159
    // Predicated region
    $region25: #{volume_loss.1} parent=5 // pred_check
      _
    $region26: #{volume_loss.1} parent=5 // pred_check_branch
      %162 = sbr.rel (%p159) target = $region28
    $region27: #{volume_loss.1} parent=5 // pred_region
      %s163 = ssub.s32 %s8, 1
      %s164 = sadd.s32 %s17, %s18
      %p165 = scmp.lt.s32.totalorder %s164, 0
      %s166 = scalar_select %p165, %s164, 0
      %s167 = smul.u32 4, %s166
      %p168 = scmp.lt.s32.totalorder %s167, 3
      %s169 = scalar_select %p168, %s167, 3
      %s170 = smul.addr %s169, 8
      %s171 = scalar_lea.vmem %s0, %s170
      %p172 = pneg %p52
      %p173 = pneg %p49
      %s174 = sadd.s32 %s17, %s18
      %p175 = scmp.lt.s32.totalorder %s174, 0
      %s176 = scalar_select %p175, %s174, 0
      %p177 = scmp.lt.s32.totalorder %s176, 0
      %s178 = scalar_select %p177, %s176, 0
      %s179 = smul.addr %s178, 8
      %s180 = scalar_lea.vmem %s1, %s179
      %p181 = pneg %p84
      %p182 = pneg %p81
      %p183 = pneg %p110
      %p184 = pneg %p107
      %p185 = scmp.lt.s32.totalorder %s17, 1
      %s186 = scalar_select %p185, %s17, 1
      %s187 = smul.addr %s186, 2
      %s188 = scalar_lea.vmem %s2, %s187
      %s189 = sadd.s32 %s17, %s18
      %p190 = scmp.lt.s32.totalorder %s189, 0
      %s191 = scalar_select %p190, %s189, 0
      %s192 = smul.u32 4, %s191
      %p193 = scmp.lt.s32.totalorder %s192, 3
      %s194 = scalar_select %p193, %s192, 3
      %s195 = smul.addr %s194, 8
      %s196 = scalar_lea.vmem %s0, %s195
      %s197 = sadd.s32 %s17, %s18
      %p198 = scmp.lt.s32.totalorder %s197, 0
      %s199 = scalar_select %p198, %s197, 0
      %s200 = smul.u32 4, %s199
      %s201 = sadd.s32 %s17, %s18
      %p202 = scmp.lt.s32.totalorder %s201, 0
      %s203 = scalar_select %p202, %s201, 0
      %p204 = scmp.lt.s32.totalorder %s203, 0
      %s205 = scalar_select %p204, %s203, 0
      %s206 = smul.addr %s205, 8
      %s207 = scalar_lea.vmem %s1, %s206
      %s208 = sadd.s32 %s17, %s18
      %p209 = scmp.lt.s32.totalorder %s208, 0
      %s210 = scalar_select %p209, %s208, 0
      %p211 = scmp.lt.s32.totalorder %s17, 1
      %s212 = scalar_select %p211, %s17, 1
      %s213 = smul.addr %s212, 2
      %s214 = scalar_lea.vmem %s2, %s213
      %p215 = scmp.eq.s32.totalorder %s18, 0
      // Predicated region
      $region29: #{volume_loss.1} parent=27 // pred_check
        %p216 = pneg %p215
      $region30: #{volume_loss.1} parent=27 // pred_check_branch
        %218 = sbr.rel (%p216) target = $region32
      $region31: #{volume_loss.1} parent=27 // pred_region
        %219 = vst [vmem:[#allocation2] sm:$0xff] 0.0
        %220 = vst [vmem:[#allocation3] sm:$0xff] 0.0
      $region32: #{volume_loss.1} parent=27 // pred_fallthru
        _
      %s221 = sadd.s32 %s17, %s18
      %s222 = smul.u32 %s221, 32
      %s223 = sadd.s32 %s222, 32
      %p224 = scmp.le.s32.totalorder %s223, 32
      // Predicated region
      $region33: #{volume_loss.1} parent=27 // pred_check
        %p225 = pneg %p224
      $region34: #{volume_loss.1} parent=27 // pred_check_branch
        %227 = sbr.rel (%p225) target = $region36
      $region35: #{volume_loss.1} parent=27 // pred_region
        %v228 = vld [vmem:[%s196] sm:$0xff]
        %v229 = vld [vmem:[%s196 + $0x8] sm:$0xff]
        %v230 = vld [vmem:[%s196 + $0x10] sm:$0xff]
        %v231 = vld [vmem:[%s196 + $0x18] sm:$0xff]
        %v232 = vld [vmem:[%s207] sm:$0xff]
        %v233 = vunpack.c.0.s8 %v232
        %v234 = vunpack.c.1.s8 %v232
        %v235 = vunpack.c.2.s8 %v232
        %v236 = vunpack.c.3.s8 %v232
        %v237 = vcvt.s32.f32 %v233
        %v238 = vcvt.s32.f32 %v234
        %v239 = vcvt.s32.f32 %v235
        %v240 = vcvt.s32.f32 %v236
        %v241 = vxor.u32 %v228, 2147483648
        %v242 = vxor.u32 %v229, 2147483648
        %v243 = vxor.u32 %v230, 2147483648
        %v244 = vxor.u32 %v231, 2147483648
        %v245 = vmul.f32 %v241, 1.442695
        %v246 = vpow.pop %v245
        %v247 = vmul.f32 %v242, 1.442695
        %v248 = vpow.pop %v247
        %v249 = vmul.f32 %v243, 1.442695
        %v250 = vpow.pop %v249
        %v251 = vmul.f32 %v244, 1.442695
        %v252 = vpow.pop %v251
        %v253 = vadd.f32 %v246, 1.0
        %v254 = vadd.f32 %v248, 1.0
        %v255 = vadd.f32 %v250, 1.0
        %v256 = vadd.f32 %v252, 1.0
        %v257 = vrcp.pop %v253
        %v258 = vmul.f32 1.0, %v257
        %v259 = vrcp.pop %v254
        %v260 = vmul.f32 1.0, %v259
        %v261 = vrcp.pop %v255
        %v262 = vmul.f32 1.0, %v261
        %v263 = vrcp.pop %v256
        %v264 = vmul.f32 1.0, %v263
        %v265 = vadd.f32 %v258, 0.0
        %v266 = vadd.f32 %v237, 0.0
        %v267 = vadd.f32 %v265, %v260
        %v268 = vadd.f32 %v266, %v238
        %v269 = vadd.f32 %v267, %v262
        %v270 = vadd.f32 %v268, %v239
        %v271 = vadd.f32 %v269, %v264
        %v272 = vadd.f32 %v270, %v240
        %v273 = vld [vmem:[#allocation2] sm:$0xff]
        %v274 = vadd.f32 %v273, %v271
        %275 = vst [vmem:[#allocation2] sm:$0xff] %v274
        %v276 = vld [vmem:[#allocation3] sm:$0xff]
        %v277 = vadd.f32 %v276, %v272
        %278 = vst [vmem:[#allocation3] sm:$0xff] %v277
      $region36: #{volume_loss.1} parent=27 // pred_fallthru
        _
      %p279 = scmp.gt.s32.totalorder %s223, 32
      // Predicated region
      $region37: #{volume_loss.1} parent=27 // pred_check
        %p280 = pneg %p279
      $region38: #{volume_loss.1} parent=27 // pred_check_branch
        %282 = sbr.rel (%p280) target = $region40
      $region39: #{volume_loss.1} parent=27 // pred_region
        %v283 = vlaneseq
        %v284 = vshrl.u32 %v283, 7
        %v285 = vadd.s32 %v284, 8
        %v286 = vadd.s32 %v284, 16
        %v287 = vadd.s32 %v284, 24
        %v288 = vld [vmem:[%s196] sm:$0xff]
        %v289 = vld [vmem:[%s196 + $0x8] sm:$0xff]
        %v290 = vld [vmem:[%s196 + $0x10] sm:$0xff]
        %v291 = vld [vmem:[%s196 + $0x18] sm:$0xff]
        %v292 = vld [vmem:[%s207] sm:$0xff]
        %v293 = vunpack.c.0.s8 %v292
        %v294 = vunpack.c.1.s8 %v292
        %v295 = vunpack.c.2.s8 %v292
        %v296 = vunpack.c.3.s8 %v292
        %v297 = vcvt.s32.f32 %v293
        %v298 = vcvt.s32.f32 %v294
        %v299 = vcvt.s32.f32 %v295
        %v300 = vcvt.s32.f32 %v296
        %v301 = vxor.u32 %v288, 2147483648
        %v302 = vxor.u32 %v289, 2147483648
        %v303 = vxor.u32 %v290, 2147483648
        %v304 = vxor.u32 %v291, 2147483648
        %v305 = vmul.f32 %v301, 1.442695
        %v306 = vpow.pop %v305
        %v307 = vmul.f32 %v302, 1.442695
        %v308 = vpow.pop %v307
        %v309 = vmul.f32 %v303, 1.442695
        %v310 = vpow.pop %v309
        %v311 = vmul.f32 %v304, 1.442695
        %v312 = vpow.pop %v311
        %v313 = vadd.f32 %v306, 1.0
        %v314 = vadd.f32 %v308, 1.0
        %v315 = vadd.f32 %v310, 1.0
        %v316 = vadd.f32 %v312, 1.0
        %v317 = vrcp.pop %v313
        %v318 = vmul.f32 1.0, %v317
        %v319 = vrcp.pop %v314
        %v320 = vmul.f32 1.0, %v319
        %v321 = vrcp.pop %v315
        %v322 = vmul.f32 1.0, %v321
        %v323 = vrcp.pop %v316
        %v324 = vmul.f32 1.0, %v323
        %s325 = sadd.s32 %s222, 0
        %v326 = vstv %s325
        %v327 = vadd.s32 %v326, %v284
        %v328 = vadd.s32 %v326, %v285
        %v329 = vadd.s32 %v326, %v286
        %v330 = vadd.s32 %v326, %v287
        %vm331 = vcmp.lt.s32.totalorder %v327, 32
        %vm332 = vcmp.lt.s32.totalorder %v328, 32
        %vm333 = vcmp.lt.s32.totalorder %v329, 32
        %vm334 = vcmp.lt.s32.totalorder %v330, 32
        %v335 = vsel %vm331, %v318, 0.0
        %v336 = vsel %vm332, %v320, 0.0
        %v337 = vsel %vm333, %v322, 0.0
        %v338 = vsel %vm334, %v324, 0.0
        %v339 = vsel %vm331, %v297, 0.0
        %v340 = vsel %vm332, %v298, 0.0
        %v341 = vsel %vm333, %v299, 0.0
        %v342 = vsel %vm334, %v300, 0.0
        %v343 = vadd.f32 %v335, 0.0
        %v344 = vadd.f32 %v339, 0.0
        %v345 = vadd.f32 %v343, %v336
        %v346 = vadd.f32 %v344, %v340
        %v347 = vadd.f32 %v345, %v337
        %v348 = vadd.f32 %v346, %v341
        %v349 = vadd.f32 %v347, %v338
        %v350 = vadd.f32 %v348, %v342
        %v351 = vld [vmem:[#allocation2] sm:$0xff]
        %v352 = vadd.f32 %v351, %v349
        %353 = vst [vmem:[#allocation2] sm:$0xff] %v352
        %v354 = vld [vmem:[#allocation3] sm:$0xff]
        %v355 = vadd.f32 %v354, %v350
        %356 = vst [vmem:[#allocation3] sm:$0xff] %v355
      $region40: #{volume_loss.1} parent=27 // pred_fallthru
        _
      // Predicated region
      $region41: #{volume_loss.1} parent=27 // pred_check
        %p357 = pneg %p215
      $region42: #{volume_loss.1} parent=27 // pred_check_branch
        %359 = sbr.rel (%p357) target = $region44
      $region43: #{volume_loss.1} parent=27 // pred_region
        %v360 = vld [vmem:[#allocation2] sm:$0xff]
        %v361 = vrot.slane %v360, 4
        %v362 = vadd.f32 %v360, %v361
        %v363 = vrot.slane %v362, 2
        %v364 = vadd.f32 %v362, %v363
        %v365 = vrot.slane %v364, 1
        %v366 = vadd.f32 %v364, %v365
        %367 = vst [vmem:[%s214] sm:$0x1] %v366
        %v368 = vld [vmem:[#allocation3] sm:$0xff]
        %v369 = vrot.slane %v368, 4
        %v370 = vadd.f32 %v368, %v369
        %v371 = vrot.slane %v370, 2
        %v372 = vadd.f32 %v370, %v371
        %v373 = vrot.slane %v372, 1
        %v374 = vadd.f32 %v372, %v373
        %375 = vst [vmem:[%s214 + $0x1] sm:$0x1] %v374
      $region44: #{volume_loss.1} parent=27 // pred_fallthru
        _
      %p376 = scmp.lt.s32.totalorder %s17, 1
      %s377 = scalar_select %p376, %s17, 1
      %s378 = smul.addr %s377, 2
      %s379 = scalar_lea.vmem %s2, %s378
      // Predicated region
      $region45: #{volume_loss.1} parent=27 // pred_check
        %p380 = pneg %p107
      $region46: #{volume_loss.1} parent=27 // pred_check_branch
        %382 = sbr.rel (%p380) target = $region48
      $region47: #{volume_loss.1} parent=27 // pred_region
        _
      $region48: #{volume_loss.1} parent=27 // pred_fallthru
        _
    $region28: #{volume_loss.1} parent=5 // pred_fallthru
      _
    %p383 = scmp.le.s32.totalorder 2, %s8
    // Predicated region
    $region49: #{volume_loss.1} parent=5 // pred_check
      %p384 = pneg %p383
    $region50: #{volume_loss.1} parent=5 // pred_check_branch
      %386 = sbr.rel (%p384) target = $region52
    $region51: #{volume_loss.1} parent=5 // pred_region
      %s387 = ssub.s32 %s8, 2
      // Predicated region
      $region53: #{volume_loss.1} parent=51 // pred_check
        %p388 = pneg %p113
      $region54: #{volume_loss.1} parent=51 // pred_check_branch
        %390 = sbr.rel (%p388) target = $region56
      $region55: #{volume_loss.1} parent=51 // pred_region
        %p391 = scmp.lt.s32.totalorder %s19, 1
        %s392 = scalar_select %p391, %s19, 1
        %s393 = smul.addr %s392, 2
        %s394 = scalar_lea.vmem %s2, %s393
      $region56: #{volume_loss.1} parent=51 // pred_fallthru
        _
    $region52: #{volume_loss.1} parent=5 // pred_fallthru
      _
  $region6: #{volume_loss.1} parent=0 // loop_footer
    %s12 = sadd.s32 1, %s8
  $region7: #{volume_loss.1} parent=0 // loop_footer_branch
    %7 = sbr.rel target = $region3
  $region8: #{volume_loss.1} parent=0 // loop_exit
    _

</llo_original>
